<compile_context>
chip_gen: v7x
topology: tpu7x:2x2x1
jax: 0.10.0
libtpu: 0.0.40
codegen_flags: <defaults>
</compile_context>

<pallas_src>
import functools

import jax
import jax.numpy as jnp
from jax import lax
from jax.experimental import pallas as pl
from jax.experimental.pallas import tpu as pltpu


def _complex_bn_kernel(x_ref, g_ref, b_ref, o_ref, *, eps, inv_n):
    # x_ref : (row_tile, NL)  packed real|imag channels, reduction axis last (lanes)
    # g_ref : (row_tile, 1)   per-row gamma (rbn rows then ibn rows)
    # b_ref : (row_tile, 1)   per-row beta
    # o_ref : (row_tile, NL)
    x = x_ref[...]                                          # f32 (R, NL)
    mean = jnp.sum(x, axis=1, keepdims=True) * inv_n        # (R, 1)
    xc = x - mean
    var = jnp.sum(xc * xc, axis=1, keepdims=True) * inv_n   # biased variance
    inv_std = lax.rsqrt(var + eps)                          # (R, 1)
    scale = inv_std * g_ref[...]                            # fold affine into epilogue
    o_ref[...] = xc * scale + b_ref[...]


def complex_batchnorm1d(x, gamma_r, beta_r, gamma_i, beta_i, *, eps=1e-5):
    """x: complex64, shape (N, C, L) or (N, C).  gamma_*/beta_*: (C,) float32.
    Returns complex64 of the same shape (training-mode batch-stat forward)."""
    squeeze_len = False
    if x.ndim == 2:
        x = x[:, :, None]
        squeeze_len = True
    N, C, L = x.shape
    NL = N * L
    R = 2 * C                                   # real rows then imag rows
    R_pad = ((R + 7) // 8) * 8                  # sublane multiple of 8
    row_tile = 8

    def to_rows(part):                          # (N, C, L) -> (C, N*L)
        return jnp.transpose(part, (1, 0, 2)).reshape(C, NL)

    xr = to_rows(jnp.real(x).astype(jnp.float32))
    xi = to_rows(jnp.imag(x).astype(jnp.float32))
    x_packed = jnp.concatenate([xr, xi], axis=0)                      # (2C, NL)
    x_packed = jnp.pad(x_packed, ((0, R_pad - R), (0, 0)))            # pad rows with 0

    g = jnp.concatenate([gamma_r, gamma_i]).astype(jnp.float32)       # (2C,)
    b = jnp.concatenate([beta_r, beta_i]).astype(jnp.float32)
    g = jnp.pad(g, (0, R_pad - R), constant_values=1.0).reshape(R_pad, 1)
    b = jnp.pad(b, (0, R_pad - R), constant_values=0.0).reshape(R_pad, 1)

    kernel = functools.partial(_complex_bn_kernel, eps=float(eps), inv_n=1.0 / NL)

    out_packed = pl.pallas_call(
        kernel,
        out_shape=jax.ShapeDtypeStruct((R_pad, NL), jnp.float32),
        grid_spec=pltpu.PrefetchScalarGridSpec(
            num_scalar_prefetch=0,
            grid=(R_pad // row_tile,),
            in_specs=[
                pl.BlockSpec((row_tile, NL), lambda r: (r, 0)),
                pl.BlockSpec((row_tile, 1), lambda r: (r, 0)),
                pl.BlockSpec((row_tile, 1), lambda r: (r, 0)),
            ],
            out_specs=pl.BlockSpec((row_tile, NL), lambda r: (r, 0)),
        ),
        compiler_params=pltpu.CompilerParams(dimension_semantics=("parallel",)),
    )(x_packed, g, b)

    def from_rows(rows):                        # (C, N*L) -> (N, C, L)
        return jnp.transpose(rows.reshape(C, N, L), (1, 0, 2))

    out_r = from_rows(out_packed[:C])
    out_i = from_rows(out_packed[C:R])
    out = (out_r + 1j * out_i).astype(jnp.complex64)
    if squeeze_len:
        out = out[:, :, 0]
    return out


def _ref_bn1d(part, gamma, beta, eps):
    """Pure-JAX reference of PyTorch BatchNorm1d training-mode forward, NCL."""
    mean = part.mean(axis=(0, 2), keepdims=True)
    var = part.var(axis=(0, 2), keepdims=True)          # biased (ddof=0)
    return (part - mean) / jnp.sqrt(var + eps) * gamma[None, :, None] \
        + beta[None, :, None]


if __name__ == "__main__":
    key = jax.random.PRNGKey(0)
    k1, k2, k3, k4, k5, k6 = jax.random.split(key, 6)

    N, C, L = 2, 4, 512
    eps = 1e-5

    xr_in = jax.random.normal(k1, (N, C, L), jnp.float32)
    xi_in = 2.0 * jax.random.normal(k2, (N, C, L), jnp.float32) + 0.5
    x = (xr_in + 1j * xi_in).astype(jnp.complex64)

    # Affine parameters of the two BatchNorm1d layers (rbn / ibn).
    gamma_r = 1.0 + 0.1 * jax.random.normal(k3, (C,), jnp.float32)
    beta_r = 0.1 * jax.random.normal(k4, (C,), jnp.float32)
    gamma_i = 1.0 + 0.1 * jax.random.normal(k5, (C,), jnp.float32)
    beta_i = 0.1 * jax.random.normal(k6, (C,), jnp.float32)

    out = complex_batchnorm1d(x, gamma_r, beta_r, gamma_i, beta_i, eps=eps)
    out = jax.block_until_ready(out)

    assert out.shape == (N, C, L), out.shape
    assert out.dtype == jnp.complex64, out.dtype

    # Numerical check against the pure-JAX / XLA reference of the same math.
    ref = (_ref_bn1d(xr_in, gamma_r, beta_r, eps)
           + 1j * _ref_bn1d(xi_in, gamma_i, beta_i, eps)).astype(jnp.complex64)
    assert jnp.allclose(out, ref, atol=1e-4, rtol=1e-4)

    print("KERNEL_OK")
</pallas_src>

<mosaic_0001>
module attributes {stable_mosaic.version = 11 : i64} {
  func.func @_complex_bn_kernel(%arg0: i32, %arg1: memref<8x1024xf32, #tpu.memory_space<vmem>>, %arg2: memref<8x1xf32, #tpu.memory_space<vmem>>, %arg3: memref<8x1xf32, #tpu.memory_space<vmem>>, %arg4: memref<8x1024xf32, #tpu.memory_space<vmem>>) attributes {dimension_semantics = [#tpu.dimension_semantics<parallel>], iteration_bounds = array<i64: 1>, scalar_prefetch = 0 : i64, scratch_operands = 0 : i64, tpu.core_type = #tpu.core_type<tc>, window_params = [{transform_indices = @transform_0, window_bounds = array<i64: 8, 1024>}, {transform_indices = @transform_1, window_bounds = array<i64: 8, 1>}, {transform_indices = @transform_2, window_bounds = array<i64: 8, 1>}, {transform_indices = @transform_3, window_bounds = array<i64: 8, 1024>}]} {
    %c0 = arith.constant 0 : index
    %c0_0 = arith.constant 0 : index
    %0 = vector.load %arg1[%c0, %c0_0] : memref<8x1024xf32, #tpu.memory_space<vmem>>, vector<8x1024xf32>
    %cst = arith.constant dense<0.000000e+00> : vector<8xf32>
    %1 = vector.multi_reduction <add>, %0, %cst [1] : vector<8x1024xf32> to vector<8xf32>
    %2 = vector.shape_cast %1 : vector<8xf32> to vector<8x1xf32>
    %cst_1 = arith.constant 9.765625E-4 : f32
    %3 = vector.broadcast %cst_1 : f32 to vector<8x1xf32>
    %4 = arith.mulf %2, %3 : vector<8x1xf32>
    %5 = vector.broadcast %4 : vector<8x1xf32> to vector<8x1024xf32>
    %6 = arith.subf %0, %5 : vector<8x1024xf32>
    %7 = arith.mulf %6, %6 : vector<8x1024xf32>
    %cst_2 = arith.constant dense<0.000000e+00> : vector<8xf32>
    %8 = vector.multi_reduction <add>, %7, %cst_2 [1] : vector<8x1024xf32> to vector<8xf32>
    %9 = vector.shape_cast %8 : vector<8xf32> to vector<8x1xf32>
    %cst_3 = arith.constant 9.765625E-4 : f32
    %10 = vector.broadcast %cst_3 : f32 to vector<8x1xf32>
    %11 = arith.mulf %9, %10 : vector<8x1xf32>
    %cst_4 = arith.constant 9.99999974E-6 : f32
    %12 = vector.broadcast %cst_4 : f32 to vector<8x1xf32>
    %13 = arith.addf %11, %12 : vector<8x1xf32>
    %14 = math.rsqrt %13 : vector<8x1xf32>
    %c0_5 = arith.constant 0 : index
    %c0_6 = arith.constant 0 : index
    %15 = vector.load %arg2[%c0_5, %c0_6] : memref<8x1xf32, #tpu.memory_space<vmem>>, vector<8x1xf32>
    %16 = arith.mulf %14, %15 : vector<8x1xf32>
    %17 = vector.broadcast %16 : vector<8x1xf32> to vector<8x1024xf32>
    %18 = arith.mulf %6, %17 : vector<8x1024xf32>
    %c0_7 = arith.constant 0 : index
    %c0_8 = arith.constant 0 : index
    %19 = vector.load %arg3[%c0_7, %c0_8] : memref<8x1xf32, #tpu.memory_space<vmem>>, vector<8x1xf32>
    %20 = vector.broadcast %19 : vector<8x1xf32> to vector<8x1024xf32>
    %21 = arith.addf %18, %20 : vector<8x1024xf32>
    %c0_9 = arith.constant 0 : index
    %c0_10 = arith.constant 0 : index
    %22 = vector.load %arg4[%c0_9, %c0_10] : memref<8x1024xf32, #tpu.memory_space<vmem>>, vector<8x1024xf32>
    tpu.vector_store %arg4[%c0_9, %c0_10], %21 {strides = array<i32>} : memref<8x1024xf32, #tpu.memory_space<vmem>>, vector<8x1024xf32>,
    return
  }
  func.func @transform_0(%arg0: i32) -> (i32, i32) {
    %c0_i32 = arith.constant 0 : i32
    %c0_i32_0 = arith.constant 0 : i32
    return %arg0, %c0_i32 : i32, i32
  }
  func.func @transform_1(%arg0: i32) -> (i32, i32) {
    %c0_i32 = arith.constant 0 : i32
    %c0_i32_0 = arith.constant 0 : i32
    return %arg0, %c0_i32 : i32, i32
  }
  func.func @transform_2(%arg0: i32) -> (i32, i32) {
    %c0_i32 = arith.constant 0 : i32
    %c0_i32_0 = arith.constant 0 : i32
    return %arg0, %c0_i32 : i32, i32
  }
  func.func @transform_3(%arg0: i32) -> (i32, i32) {
    %c0_i32 = arith.constant 0 : i32
    %c0_i32_0 = arith.constant 0 : i32
    return %arg0, %c0_i32 : i32, i32
  }
}

</mosaic_0001>

<llo_original>
// kernel: tpu_custom_call.1
$region0: #{tpu_custom_call.1}
  #allocation0 [shape = 'u32[]', space=smem, size = 0x4, offset = 0x4, fixed_abs, tag = 'smem constant byte address 0x4 - core index']
  #allocation1 [shape = 'u32[144,128]{1,0:T(1,128)}', space=vmem, size = 0x12000, scoped, tag = 'internal scratch']
  %s0 = inlined_call_operand.hbm [shape: f32[8,1024], index: 0, kind: input, shape index: {}]
  %s1 = inlined_call_operand.vmem [shape: f32[8,1], index: 1, kind: input, shape index: {}]
  %s2 = inlined_call_operand.vmem [shape: f32[8,1], index: 2, kind: input, shape index: {}]
  %s3 = inlined_call_operand.hbm [shape: f32[8,1024], index: 3, kind: output, shape index: {}]
  %s4 = sld [smem:[#allocation0]]
  $region26: #{tpu_custom_call.1} parent=0
    _
  %s6 = ssub.s32 1, %s4
  %s7 = scalar_select 0, %s6, %s4
  $region1: #{tpu_custom_call.1} parent=0
    #allocation2 [shape = 'u8[32768]{0}', space=vmem, size = 0x8000, scoped, tag = 'input window, operand 0, single buffered']
    #allocation3 [shape = 's32[1]{0}', space=sflag, size = 0x4, scoped, tag = 'scoped memory for tpu_custom_call.1']
    #allocation4 [shape = 's32[1]{0}', space=sflag, size = 0x4, scoped, tag = 'scoped memory for tpu_custom_call.1']
    #allocation5 [shape = 'u8[32768]{0}', space=vmem, size = 0x8000, scoped, tag = 'output window, operand 0, single buffered']
    %8 = vsyncpa [#allocation3], 0
    %9 = vsyncpa [#allocation4], 0
    // Predicated region
    $region2: #{tpu_custom_call.1} parent=1 // pred_check
      _
    $region3: #{tpu_custom_call.1} parent=1 // pred_check_branch
      %11 = sbr.rel (0) target = $region5
    $region4: #{tpu_custom_call.1} parent=1 // pred_region
      %s13 = ssub.s32 1024, 1024
      %14 = vsyncadd [#allocation3], %s13
      %s16 = sshll.u32 [#allocation2], 4
      %s17 = int_to_ptr.vmem [resolvable:$true] %s16
      %19 = dma.hbm_to_vmem [thread:$0]  %s0, 1024, %s17, [#allocation3]
    $region5: #{tpu_custom_call.1} parent=1 // pred_fallthru
      _
    // Predicated region
    $region6: #{tpu_custom_call.1} parent=1 // pred_check
      _
    $region7: #{tpu_custom_call.1} parent=1 // pred_check_branch
      %21 = sbr.rel (0) target = $region9
    $region8: #{tpu_custom_call.1} parent=1 // pred_region
      _
    $region9: #{tpu_custom_call.1} parent=1 // pred_fallthru
      _
    // Predicated region
    $region10: #{tpu_custom_call.1} parent=1 // pred_check
      _
    $region11: #{tpu_custom_call.1} parent=1 // pred_check_branch
      %23 = sbr.rel (0) target = $region13
    $region12: #{tpu_custom_call.1} parent=1 // pred_region
      _
    $region13: #{tpu_custom_call.1} parent=1 // pred_fallthru
      _
    // Predicated region
    $region14: #{tpu_custom_call.1} parent=1 // pred_check
      _
    $region15: #{tpu_custom_call.1} parent=1 // pred_check_branch
      %25 = sbr.rel (0) target = $region17
    $region16: #{tpu_custom_call.1} parent=1 // pred_region
      %26 = dma.done [#allocation3], 1024
    $region17: #{tpu_custom_call.1} parent=1 // pred_fallthru
      _
    %v27 = vld [vmem:[#allocation2] sm:$0xff]
    %v28 = vld [vmem:[#allocation2 + $0x8] sm:$0xff]
    %v29 = vld [vmem:[#allocation2 + $0x10] sm:$0xff]
    %v30 = vld [vmem:[#allocation2 + $0x18] sm:$0xff]
    %v31 = vld [vmem:[#allocation2 + $0x20] sm:$0xff]
    %v32 = vld [vmem:[#allocation2 + $0x28] sm:$0xff]
    %v33 = vld [vmem:[#allocation2 + $0x30] sm:$0xff]
    %v34 = vld [vmem:[#allocation2 + $0x38] sm:$0xff]
    %v35 = vadd.f32 %v27, %v28
    %v36 = vadd.f32 %v35, %v29
    %v37 = vadd.f32 %v36, %v30
    %v38 = vadd.f32 %v37, %v31
    %v39 = vadd.f32 %v38, %v32
    %v40 = vadd.f32 %v39, %v33
    %v41 = vadd.f32 %v40, %v34
    %42 = vadd.xlane.f32.xlu0 %v41
    %v43 = vpop.xlane.xlu0 %42
    %v44 = vmul.f32 %v43, 0.0009765625
    %v45 = vsub.f32 %v27, %v44
    %v46 = vsub.f32 %v28, %v44
    %v47 = vsub.f32 %v29, %v44
    %v48 = vsub.f32 %v30, %v44
    %v49 = vsub.f32 %v31, %v44
    %v50 = vsub.f32 %v32, %v44
    %v51 = vsub.f32 %v33, %v44
    %v52 = vsub.f32 %v34, %v44
    %v53 = vmul.f32 %v45, %v45
    %v54 = vmul.f32 %v46, %v46
    %v55 = vmul.f32 %v47, %v47
    %v56 = vmul.f32 %v48, %v48
    %v57 = vmul.f32 %v49, %v49
    %v58 = vmul.f32 %v50, %v50
    %v59 = vmul.f32 %v51, %v51
    %v60 = vmul.f32 %v52, %v52
    %v61 = vadd.f32 %v53, %v54
    %v62 = vadd.f32 %v61, %v55
    %v63 = vadd.f32 %v62, %v56
    %v64 = vadd.f32 %v63, %v57
    %v65 = vadd.f32 %v64, %v58
    %v66 = vadd.f32 %v65, %v59
    %v67 = vadd.f32 %v66, %v60
    %68 = vadd.xlane.f32.xlu0 %v67
    %v69 = vpop.xlane.xlu0 %68
    %v70 = vmul.f32 %v69, 0.0009765625
    %v71 = vadd.f32 %v70, 1e-05
    %v72 = vrsqrt.pop %v71
    %v73 = vld [vmem:[%s1] sm:$0xff]
    %v74 = vmul.f32 %v72, %v73
    %76 = vset.pattern.permute.xlu0 0
    %77 = vperm.xlu0 %76, %v74
    %v78 = vpop.permute.xlu0 %77
    %v80 = vmul.f32 %v45, %v78
    %v81 = vmul.f32 %v46, %v78
    %v82 = vmul.f32 %v47, %v78
    %v83 = vmul.f32 %v48, %v78
    %v84 = vmul.f32 %v49, %v78
    %v85 = vmul.f32 %v50, %v78
    %v86 = vmul.f32 %v51, %v78
    %v87 = vmul.f32 %v52, %v78
    %v88 = vld [vmem:[%s2] sm:$0xff]
    %90 = vset.pattern.permute.xlu0 0
    %91 = vperm.xlu0 %90, %v88
    %v92 = vpop.permute.xlu0 %91
    %v94 = vadd.f32 %v80, %v92
    %v95 = vadd.f32 %v81, %v92
    %v96 = vadd.f32 %v82, %v92
    %v97 = vadd.f32 %v83, %v92
    %v98 = vadd.f32 %v84, %v92
    %v99 = vadd.f32 %v85, %v92
    %v100 = vadd.f32 %v86, %v92
    %v101 = vadd.f32 %v87, %v92
    %102 = vst [vmem:[#allocation5] sm:$0xff] %v94
    %103 = vst [vmem:[#allocation5 + $0x8] sm:$0xff] %v95
    %104 = vst [vmem:[#allocation5 + $0x10] sm:$0xff] %v96
    %105 = vst [vmem:[#allocation5 + $0x18] sm:$0xff] %v97
    %106 = vst [vmem:[#allocation5 + $0x20] sm:$0xff] %v98
    %107 = vst [vmem:[#allocation5 + $0x28] sm:$0xff] %v99
    %108 = vst [vmem:[#allocation5 + $0x30] sm:$0xff] %v100
    %109 = vst [vmem:[#allocation5 + $0x38] sm:$0xff] %v101
    // Predicated region
    $region18: #{tpu_custom_call.1} parent=1 // pred_check
      _
    $region19: #{tpu_custom_call.1} parent=1 // pred_check_branch
      %111 = sbr.rel (0) target = $region21
    $region20: #{tpu_custom_call.1} parent=1 // pred_region
      %s113 = ssub.s32 1024, 1024
      %114 = vsyncadd [#allocation4], %s113
      %s116 = sshll.u32 [#allocation5], 4
      %s117 = int_to_ptr.vmem [resolvable:$true] %s116
      %119 = dma.vmem_to_hbm [thread:$0]  %s117, 1024, %s3, [#allocation4]
    $region21: #{tpu_custom_call.1} parent=1 // pred_fallthru
      _
    // Predicated region
    $region22: #{tpu_custom_call.1} parent=1 // pred_check
      _
    $region23: #{tpu_custom_call.1} parent=1 // pred_check_branch
      %121 = sbr.rel (0) target = $region25
    $region24: #{tpu_custom_call.1} parent=1 // pred_region
      %122 = dma.done [#allocation4], 1024
    $region25: #{tpu_custom_call.1} parent=1 // pred_fallthru
      _
    %123 = vsyncpa [#allocation3], 1
    %124 = vsyncpa [#allocation4], 1

</llo_original>
